<compile_context>
chip_gen: v7x
topology: tpu7x:2x2x1
jax: 0.10.0
libtpu: 0.0.40
codegen_flags: <defaults>
</compile_context>

<pallas_src>
import jax
import jax.numpy as jnp
import numpy as np
from jax.experimental import pallas as pl
from jax.experimental.pallas import tpu as pltpu

EPS = 1e-5  # PyTorch InstanceNorm1d default


def _instance_norm(h, gamma, beta):
    # h: (C, L); normalize over L per channel.
    # One-pass stats: biased variance (matches PyTorch InstanceNorm1d).
    mean = jnp.mean(h, axis=1, keepdims=True)
    var = jnp.maximum(jnp.mean(h * h, axis=1, keepdims=True) - mean * mean, 0.0)
    return (h - mean) * jax.lax.rsqrt(var + EPS) * gamma + beta


def residual_layer_kernel(xpad_ref, wg_ref, wo_ref, ng_ref, no_ref, out_ref):
    cin = out_ref.shape[1]
    L = out_ref.shape[2]
    lpad = xpad_ref.shape[2]
    pad = (lpad - L) // 2
    cout = wg_ref.shape[0] // 2
    K = wg_ref.shape[1] // cin

    xpad = xpad_ref[0]                                          # (Cin, Lpad)

    # ---- both gate convs as ONE im2col matmul ------------------------------
    # xcol row index = t*Cin + c  <->  wg column index (packed in wrapper).
    xcol = jnp.concatenate([xpad[:, t:t + L] for t in range(K)], axis=0)
    hcat = jnp.dot(wg_ref[...], xcol,
                   preferred_element_type=jnp.float32)          # (2*Cout, L)
    # conv biases intentionally dropped: cancelled by the mean subtraction.

    hn = _instance_norm(hcat, ng_ref[0], ng_ref[1])             # fused 2 norms
    glu = hn[:cout] * jax.nn.sigmoid(hn[cout:])                 # (Cout, L)

    # ---- output conv (Cout -> Cin): pad as a value, single im2col matmul ---
    if pad > 0:
        zcols = jnp.zeros((cout, pad), jnp.float32)
        glu_pad = jnp.concatenate([zcols, glu, zcols], axis=1)  # (Cout, Lpad)
    else:
        glu_pad = glu
    gcol = jnp.concatenate([glu_pad[:, t:t + L] for t in range(K)], axis=0)
    h2 = jnp.dot(wo_ref[...], gcol,
                 preferred_element_type=jnp.float32)            # (Cin, L)
    h2n = _instance_norm(h2, no_ref[0], no_ref[1])

    # ---- residual add -------------------------------------------------------
    out_ref[0] = xpad[:, pad:pad + L] + h2n


def residual_layer(x, p, padding):
    """x: (B, Cin, L) float32.  p: packed params (see pack_params)."""
    B, Cin, L = x.shape
    Lpad = L + 2 * padding
    xpad = jnp.pad(x, ((0, 0), (0, 0), (padding, padding)))

    wg, wo, ng, no = p["wg"], p["wo"], p["ng"], p["no"]

    grid_spec = pltpu.PrefetchScalarGridSpec(
        num_scalar_prefetch=0,
        grid=(B,),
        in_specs=[
            pl.BlockSpec((1, Cin, Lpad), lambda b: (b, 0, 0)),
            pl.BlockSpec(wg.shape, lambda b: (0, 0)),
            pl.BlockSpec(wo.shape, lambda b: (0, 0)),
            pl.BlockSpec(ng.shape, lambda b: (0, 0, 0)),
            pl.BlockSpec(no.shape, lambda b: (0, 0, 0)),
        ],
        out_specs=pl.BlockSpec((1, Cin, L), lambda b: (b, 0, 0)),
    )
    return pl.pallas_call(
        residual_layer_kernel,
        out_shape=jax.ShapeDtypeStruct((B, Cin, L), jnp.float32),
        grid_spec=grid_spec,
        compiler_params=pltpu.CompilerParams(
            dimension_semantics=("parallel",)),
    )(xpad, wg, wo, ng, no)


def pack_params(raw):
    """Repack PyTorch-shaped params into the kernel's fused/im2col layout."""
    Cout, Cin, K = raw["w1"].shape
    # Conv1d weight (O, I, K) -> im2col weight (O, K*I) with column t*I + i.
    w1 = jnp.transpose(raw["w1"], (0, 2, 1)).reshape(Cout, K * Cin)
    w2 = jnp.transpose(raw["w2"], (0, 2, 1)).reshape(Cout, K * Cin)
    wg = jnp.concatenate([w1, w2], axis=0)                      # (2*Cout, K*Cin)
    wo = jnp.transpose(raw["w3"], (0, 2, 1)).reshape(Cin, K * Cout)
    # Affine params packed as (2, C, 1): [0] = gamma, [1] = beta.
    ng = jnp.stack([jnp.concatenate([raw["g1"], raw["g2"]]),
                    jnp.concatenate([raw["bt1"], raw["bt2"]])])[:, :, None]
    no = jnp.stack([raw["g3"], raw["bt3"]])[:, :, None]
    # Conv biases b1/b2/b3 are NOT passed: they are exact no-ops under
    # InstanceNorm (per-channel constants removed by the mean subtraction).
    return {"wg": wg, "wo": wo, "ng": ng, "no": no}


# ----------------------------- reference (plain JAX) -----------------------
def _conv1d_ref(x, w_oik, b, padding):
    y = jax.lax.conv_general_dilated(
        x, w_oik, window_strides=(1,), padding=[(padding, padding)],
        dimension_numbers=("NCH", "OIH", "NCH"),
        precision=jax.lax.Precision.HIGHEST)
    return y + b[None, :, None]


def _inorm_ref(y, g, bt):
    m = y.mean(axis=2, keepdims=True)
    v = ((y - m) ** 2).mean(axis=2, keepdims=True)
    return (y - m) / jnp.sqrt(v + EPS) * g[None, :, None] + bt[None, :, None]


def residual_layer_ref(x, raw, padding):
    h1 = _inorm_ref(_conv1d_ref(x, raw["w1"], raw["b1"], padding),
                    raw["g1"], raw["bt1"])
    hg = _inorm_ref(_conv1d_ref(x, raw["w2"], raw["b2"], padding),
                    raw["g2"], raw["bt2"])
    glu = h1 * jax.nn.sigmoid(hg)
    h2 = _inorm_ref(_conv1d_ref(glu, raw["w3"], raw["b3"], padding),
                    raw["g3"], raw["bt3"])
    return x + h2


# ----------------------------------- main -----------------------------------
if __name__ == "__main__":
    B, Cin, Cout, L, K, padding = 2, 8, 16, 32, 3, 1

    key = jax.random.PRNGKey(0)
    keys = jax.random.split(key, 13)

    # PyTorch-shaped parameters (Conv1d weight: (out, in, K)).
    raw = {
        "w1": 0.1 * jax.random.normal(keys[0], (Cout, Cin, K), jnp.float32),
        "b1": 0.1 * jax.random.normal(keys[1], (Cout,), jnp.float32),
        "g1": 1.0 + 0.1 * jax.random.normal(keys[2], (Cout,), jnp.float32),
        "bt1": 0.1 * jax.random.normal(keys[3], (Cout,), jnp.float32),
        "w2": 0.1 * jax.random.normal(keys[4], (Cout, Cin, K), jnp.float32),
        "b2": 0.1 * jax.random.normal(keys[5], (Cout,), jnp.float32),
        "g2": 1.0 + 0.1 * jax.random.normal(keys[6], (Cout,), jnp.float32),
        "bt2": 0.1 * jax.random.normal(keys[7], (Cout,), jnp.float32),
        "w3": 0.1 * jax.random.normal(keys[8], (Cin, Cout, K), jnp.float32),
        "b3": 0.1 * jax.random.normal(keys[9], (Cin,), jnp.float32),
        "g3": 1.0 + 0.1 * jax.random.normal(keys[10], (Cin,), jnp.float32),
        "bt3": 0.1 * jax.random.normal(keys[11], (Cin,), jnp.float32),
    }
    params = pack_params(raw)

    x = jax.random.normal(keys[12], (B, Cin, L), jnp.float32)

    out = jax.block_until_ready(residual_layer(x, params, padding))
    ref = jax.block_until_ready(residual_layer_ref(x, raw, padding))
    np.testing.assert_allclose(np.asarray(out), np.asarray(ref),
                               rtol=1e-4, atol=1e-4)

    print("KERNEL_OK")
</pallas_src>

<mosaic_0001>
module attributes {stable_mosaic.version = 11 : i64} {
  func.func @residual_layer_kernel(%arg0: i32, %arg1: memref<1x8x34xf32, #tpu.memory_space<vmem>>, %arg2: memref<32x24xf32, #tpu.memory_space<vmem>>, %arg3: memref<8x48xf32, #tpu.memory_space<vmem>>, %arg4: memref<2x32x1xf32, #tpu.memory_space<vmem>>, %arg5: memref<2x8x1xf32, #tpu.memory_space<vmem>>, %arg6: memref<1x8x32xf32, #tpu.memory_space<vmem>>) attributes {dimension_semantics = [#tpu.dimension_semantics<parallel>], iteration_bounds = array<i64: 2>, scalar_prefetch = 0 : i64, scratch_operands = 0 : i64, tpu.core_type = #tpu.core_type<tc>, window_params = [{transform_indices = @transform_0, window_bounds = array<i64: 1, 8, 34>}, {pipeline_mode = #tpu.pipeline_mode<synchronous>, transform_indices = @transform_1, window_bounds = array<i64: 32, 24>}, {pipeline_mode = #tpu.pipeline_mode<synchronous>, transform_indices = @transform_2, window_bounds = array<i64: 8, 48>}, {pipeline_mode = #tpu.pipeline_mode<synchronous>, transform_indices = @transform_3, window_bounds = array<i64: 2, 32, 1>}, {pipeline_mode = #tpu.pipeline_mode<synchronous>, transform_indices = @transform_4, window_bounds = array<i64: 2, 8, 1>}, {transform_indices = @transform_5, window_bounds = array<i64: 1, 8, 32>}]} {
    %c0 = arith.constant 0 : index
    %c0_0 = arith.constant 0 : index
    %c0_1 = arith.constant 0 : index
    %0 = vector.load %arg1[%c0, %c0_0, %c0_1] : memref<1x8x34xf32, #tpu.memory_space<vmem>>, vector<1x8x34xf32>
    %1 = vector.shape_cast %0 : vector<1x8x34xf32> to vector<8x34xf32>
    %2 = vector.extract_strided_slice %1 {offsets = [0, 0], sizes = [8, 32], strides = [1, 1]} : vector<8x34xf32> to vector<8x32xf32>
    %3 = vector.extract_strided_slice %1 {offsets = [0, 1], sizes = [8, 32], strides = [1, 1]} : vector<8x34xf32> to vector<8x32xf32>
    %4 = vector.extract_strided_slice %1 {offsets = [0, 2], sizes = [8, 32], strides = [1, 1]} : vector<8x34xf32> to vector<8x32xf32>
    %5 = tpu.concatenate %2, %3, %4 in 0 : vector<8x32xf32>, vector<8x32xf32>, vector<8x32xf32> -> vector<24x32xf32>
    %c0_2 = arith.constant 0 : index
    %c0_3 = arith.constant 0 : index
    %6 = vector.load %arg2[%c0_2, %c0_3] : memref<32x24xf32, #tpu.memory_space<vmem>>, vector<32x24xf32>
    %cst = arith.constant dense<0.000000e+00> : vector<32x32xf32>
    %7 = tpu.matmul %6, %5, %cst {dimension_numbers = #tpu.dot_dimension_numbers<[1], [0], [0], [1], [0, 0, 1, 1], [], []>} : vector<32x24xf32>, vector<24x32xf32>, vector<32x32xf32> -> vector<32x32xf32>
    %c0_4 = arith.constant 0 : index
    %c0_5 = arith.constant 0 : index
    %c0_6 = arith.constant 0 : index
    %8 = vector.load %arg4[%c0_4, %c0_5, %c0_6] : memref<2x32x1xf32, #tpu.memory_space<vmem>>, vector<1x32x1xf32>
    %9 = vector.shape_cast %8 : vector<1x32x1xf32> to vector<32x1xf32>
    %c1 = arith.constant 1 : index
    %c0_7 = arith.constant 0 : index
    %c0_8 = arith.constant 0 : index
    %10 = vector.load %arg4[%c1, %c0_7, %c0_8] : memref<2x32x1xf32, #tpu.memory_space<vmem>>, vector<1x32x1xf32>
    %11 = vector.shape_cast %10 : vector<1x32x1xf32> to vector<32x1xf32>
    %cst_9 = arith.constant dense<0.000000e+00> : vector<32xf32>
    %12 = vector.multi_reduction <add>, %7, %cst_9 [1] : vector<32x32xf32> to vector<32xf32>
    %13 = vector.shape_cast %12 : vector<32xf32> to vector<32x1xf32>
    %cst_10 = arith.constant 3.200000e+01 : f32
    %14 = vector.broadcast %cst_10 : f32 to vector<32x1xf32>
    %15 = arith.divf %13, %14 : vector<32x1xf32>
    %16 = arith.mulf %7, %7 : vector<32x32xf32>
    %cst_11 = arith.constant dense<0.000000e+00> : vector<32xf32>
    %17 = vector.multi_reduction <add>, %16, %cst_11 [1] : vector<32x32xf32> to vector<32xf32>
    %18 = vector.shape_cast %17 : vector<32xf32> to vector<32x1xf32>
    %cst_12 = arith.constant 3.200000e+01 : f32
    %19 = vector.broadcast %cst_12 : f32 to vector<32x1xf32>
    %20 = arith.divf %18, %19 : vector<32x1xf32>
    %21 = arith.mulf %15, %15 : vector<32x1xf32>
    %22 = arith.subf %20, %21 : vector<32x1xf32>
    %cst_13 = arith.constant 0.000000e+00 : f32
    %23 = vector.broadcast %cst_13 : f32 to vector<32x1xf32>
    %24 = arith.maximumf %22, %23 : vector<32x1xf32>
    %25 = vector.broadcast %15 : vector<32x1xf32> to vector<32x32xf32>
    %26 = arith.subf %7, %25 : vector<32x32xf32>
    %cst_14 = arith.constant 9.99999974E-6 : f32
    %27 = vector.broadcast %cst_14 : f32 to vector<32x1xf32>
    %28 = arith.addf %24, %27 : vector<32x1xf32>
    %29 = math.rsqrt %28 : vector<32x1xf32>
    %30 = vector.broadcast %29 : vector<32x1xf32> to vector<32x32xf32>
    %31 = arith.mulf %26, %30 : vector<32x32xf32>
    %32 = vector.broadcast %9 : vector<32x1xf32> to vector<32x32xf32>
    %33 = arith.mulf %31, %32 : vector<32x32xf32>
    %34 = vector.broadcast %11 : vector<32x1xf32> to vector<32x32xf32>
    %35 = arith.addf %33, %34 : vector<32x32xf32>
    %36 = vector.extract_strided_slice %35 {offsets = [0, 0], sizes = [16, 32], strides = [1, 1]} : vector<32x32xf32> to vector<16x32xf32>
    %37 = vector.extract_strided_slice %35 {offsets = [16, 0], sizes = [16, 32], strides = [1, 1]} : vector<32x32xf32> to vector<16x32xf32>
    %38 = arith.negf %37 : vector<16x32xf32>
    %39 = math.exp %38 : vector<16x32xf32>
    %cst_15 = arith.constant 1.000000e+00 : f32
    %40 = vector.broadcast %cst_15 : f32 to vector<16x32xf32>
    %41 = arith.addf %40, %39 : vector<16x32xf32>
    %42 = arith.divf %40, %41 : vector<16x32xf32>
    %43 = arith.mulf %36, %42 : vector<16x32xf32>
    %cst_16 = arith.constant 0.000000e+00 : f32
    %44 = vector.broadcast %cst_16 : f32 to vector<16x1xf32>
    %45 = tpu.concatenate %44, %43, %44 in 1 : vector<16x1xf32>, vector<16x32xf32>, vector<16x1xf32> -> vector<16x34xf32>
    %46 = vector.extract_strided_slice %45 {offsets = [0, 0], sizes = [16, 32], strides = [1, 1]} : vector<16x34xf32> to vector<16x32xf32>
    %47 = vector.extract_strided_slice %45 {offsets = [0, 1], sizes = [16, 32], strides = [1, 1]} : vector<16x34xf32> to vector<16x32xf32>
    %48 = vector.extract_strided_slice %45 {offsets = [0, 2], sizes = [16, 32], strides = [1, 1]} : vector<16x34xf32> to vector<16x32xf32>
    %49 = tpu.concatenate %46, %47, %48 in 0 : vector<16x32xf32>, vector<16x32xf32>, vector<16x32xf32> -> vector<48x32xf32>
    %c0_17 = arith.constant 0 : index
    %c0_18 = arith.constant 0 : index
    %50 = vector.load %arg3[%c0_17, %c0_18] : memref<8x48xf32, #tpu.memory_space<vmem>>, vector<8x48xf32>
    %cst_19 = arith.constant dense<0.000000e+00> : vector<8x32xf32>
    %51 = tpu.matmul %50, %49, %cst_19 {dimension_numbers = #tpu.dot_dimension_numbers<[1], [0], [0], [1], [0, 0, 1, 1], [], []>} : vector<8x48xf32>, vector<48x32xf32>, vector<8x32xf32> -> vector<8x32xf32>
    %c0_20 = arith.constant 0 : index
    %c0_21 = arith.constant 0 : index
    %c0_22 = arith.constant 0 : index
    %52 = vector.load %arg5[%c0_20, %c0_21, %c0_22] : memref<2x8x1xf32, #tpu.memory_space<vmem>>, vector<1x8x1xf32>
    %53 = vector.shape_cast %52 : vector<1x8x1xf32> to vector<8x1xf32>
    %c1_23 = arith.constant 1 : index
    %c0_24 = arith.constant 0 : index
    %c0_25 = arith.constant 0 : index
    %54 = vector.load %arg5[%c1_23, %c0_24, %c0_25] : memref<2x8x1xf32, #tpu.memory_space<vmem>>, vector<1x8x1xf32>
    %55 = vector.shape_cast %54 : vector<1x8x1xf32> to vector<8x1xf32>
    %cst_26 = arith.constant dense<0.000000e+00> : vector<8xf32>
    %56 = vector.multi_reduction <add>, %51, %cst_26 [1] : vector<8x32xf32> to vector<8xf32>
    %57 = vector.shape_cast %56 : vector<8xf32> to vector<8x1xf32>
    %cst_27 = arith.constant 3.200000e+01 : f32
    %58 = vector.broadcast %cst_27 : f32 to vector<8x1xf32>
    %59 = arith.divf %57, %58 : vector<8x1xf32>
    %60 = arith.mulf %51, %51 : vector<8x32xf32>
    %cst_28 = arith.constant dense<0.000000e+00> : vector<8xf32>
    %61 = vector.multi_reduction <add>, %60, %cst_28 [1] : vector<8x32xf32> to vector<8xf32>
    %62 = vector.shape_cast %61 : vector<8xf32> to vector<8x1xf32>
    %cst_29 = arith.constant 3.200000e+01 : f32
    %63 = vector.broadcast %cst_29 : f32 to vector<8x1xf32>
    %64 = arith.divf %62, %63 : vector<8x1xf32>
    %65 = arith.mulf %59, %59 : vector<8x1xf32>
    %66 = arith.subf %64, %65 : vector<8x1xf32>
    %cst_30 = arith.constant 0.000000e+00 : f32
    %67 = vector.broadcast %cst_30 : f32 to vector<8x1xf32>
    %68 = arith.maximumf %66, %67 : vector<8x1xf32>
    %69 = vector.broadcast %59 : vector<8x1xf32> to vector<8x32xf32>
    %70 = arith.subf %51, %69 : vector<8x32xf32>
    %cst_31 = arith.constant 9.99999974E-6 : f32
    %71 = vector.broadcast %cst_31 : f32 to vector<8x1xf32>
    %72 = arith.addf %68, %71 : vector<8x1xf32>
    %73 = math.rsqrt %72 : vector<8x1xf32>
    %74 = vector.broadcast %73 : vector<8x1xf32> to vector<8x32xf32>
    %75 = arith.mulf %70, %74 : vector<8x32xf32>
    %76 = vector.broadcast %53 : vector<8x1xf32> to vector<8x32xf32>
    %77 = arith.mulf %75, %76 : vector<8x32xf32>
    %78 = vector.broadcast %55 : vector<8x1xf32> to vector<8x32xf32>
    %79 = arith.addf %77, %78 : vector<8x32xf32>
    %80 = vector.extract_strided_slice %1 {offsets = [0, 1], sizes = [8, 32], strides = [1, 1]} : vector<8x34xf32> to vector<8x32xf32>
    %81 = arith.addf %80, %79 : vector<8x32xf32>
    %c0_32 = arith.constant 0 : index
    %c0_33 = arith.constant 0 : index
    %c0_34 = arith.constant 0 : index
    %82 = vector.load %arg6[%c0_32, %c0_33, %c0_34] : memref<1x8x32xf32, #tpu.memory_space<vmem>>, vector<1x8x32xf32>
    %83 = vector.shape_cast %82 : vector<1x8x32xf32> to vector<8x32xf32>
    %84 = vector.shape_cast %81 : vector<8x32xf32> to vector<1x8x32xf32>
    tpu.vector_store %arg6[%c0_32, %c0_33, %c0_34], %84 {strides = array<i32>} : memref<1x8x32xf32, #tpu.memory_space<vmem>>, vector<1x8x32xf32>,
    return
  }
  func.func @transform_0(%arg0: i32) -> (i32, i32, i32) {
    %c0_i32 = arith.constant 0 : i32
    %c0_i32_0 = arith.constant 0 : i32
    %c0_i32_1 = arith.constant 0 : i32
    return %arg0, %c0_i32, %c0_i32_0 : i32, i32, i32
  }
  func.func @transform_1(%arg0: i32) -> (i32, i32) {
    %c0_i32 = arith.constant 0 : i32
    %c0_i32_0 = arith.constant 0 : i32
    %c0_i32_1 = arith.constant 0 : i32
    return %c0_i32, %c0_i32_0 : i32, i32
  }
  func.func @transform_2(%arg0: i32) -> (i32, i32) {
    %c0_i32 = arith.constant 0 : i32
    %c0_i32_0 = arith.constant 0 : i32
    %c0_i32_1 = arith.constant 0 : i32
    return %c0_i32, %c0_i32_0 : i32, i32
  }
  func.func @transform_3(%arg0: i32) -> (i32, i32, i32) {
    %c0_i32 = arith.constant 0 : i32
    %c0_i32_0 = arith.constant 0 : i32
    %c0_i32_1 = arith.constant 0 : i32
    %c0_i32_2 = arith.constant 0 : i32
    return %c0_i32, %c0_i32_0, %c0_i32_1 : i32, i32, i32
  }
  func.func @transform_4(%arg0: i32) -> (i32, i32, i32) {
    %c0_i32 = arith.constant 0 : i32
    %c0_i32_0 = arith.constant 0 : i32
    %c0_i32_1 = arith.constant 0 : i32
    %c0_i32_2 = arith.constant 0 : i32
    return %c0_i32, %c0_i32_0, %c0_i32_1 : i32, i32, i32
  }
  func.func @transform_5(%arg0: i32) -> (i32, i32, i32) {
    %c0_i32 = arith.constant 0 : i32
    %c0_i32_0 = arith.constant 0 : i32
    %c0_i32_1 = arith.constant 0 : i32
    return %arg0, %c0_i32, %c0_i32_0 : i32, i32, i32
  }
}

</mosaic_0001>

<llo_original>
// kernel: tpu_custom_call.1
$region0: #{tpu_custom_call.1}
  #allocation0 [shape = 'u32[]', space=smem, size = 0x4, offset = 0x4, fixed_abs, tag = 'smem constant byte address 0x4 - core index']
  #allocation1 [shape = 'u32[144,128]{1,0:T(1,128)}', space=vmem, size = 0x12000, scoped, tag = 'internal scratch']
  %s0 = inlined_call_operand.vmem [shape: f32[2,8,34], index: 0, kind: input, shape index: {}]
  %s1 = inlined_call_operand.vmem [shape: f32[32,24], index: 1, kind: input, shape index: {}]
  %s2 = inlined_call_operand.vmem [shape: f32[8,48], index: 2, kind: input, shape index: {}]
  %s3 = inlined_call_operand.vmem [shape: f32[2,32,1], index: 3, kind: input, shape index: {}]
  %s4 = inlined_call_operand.vmem [shape: f32[2,8,1], index: 4, kind: input, shape index: {}]
  %s5 = inlined_call_operand.hbm [shape: f32[2,8,32], index: 5, kind: output, shape index: {}]
  %s6 = sld [smem:[#allocation0]]
  $region53: #{tpu_custom_call.1} parent=0
    _
  %s8 = ssub.s32 1, %s6
  %s9 = scalar_select 0, %s8, %s6
  $region1: #{tpu_custom_call.1} parent=0
    #allocation2 [shape = 'u8[8192]{0}', space=vmem, size = 0x2000, scoped, tag = 'output window, operand 0']
    #allocation3 [shape = 's32[2]{0}', space=sflag, size = 0x8, scoped, tag = 'scoped memory for tpu_custom_call.1']
    %10 = vsyncpa [#allocation3], 0
    %s11 = scalar_lea.sflag [#allocation3], 1
    %12 = vsyncpa %s11, 0
    loop: start=0, step=1, limit=4
    $region2: #{tpu_custom_call.1} parent=1 // loop_pre_header
      _
    $region3: #{tpu_custom_call.1} parent=1 // loop_header
      %s14 = sphi 0, %s18
      %p15 = scmp.ge.s32.totalorder %s14, 4
      %s24 = sphi 0, %s26
      %s27 = sphi 0, %s24
      %s28 = sphi 0, %s27
      %s44 = sphi 0, %s28
      %s48 = sphi 0, %s48
      %s50 = sphi 0, %s48
      %s51 = sphi 0, %s50
      %s65 = sphi 0, %s51
      %s69 = sphi 0, %s69
      %s71 = sphi 0, %s69
      %s72 = sphi 0, %s71
      %s86 = sphi 0, %s72
      %s90 = sphi 0, %s90
      %s92 = sphi 0, %s90
      %s93 = sphi 0, %s92
      %s107 = sphi 0, %s93
      %s111 = sphi 0, %s111
      %s113 = sphi 0, %s111
      %s114 = sphi 0, %s113
      %s128 = sphi 0, %s114
      %s134 = sphi 0, %s136
      %s137 = sphi 0, %s134
      %s138 = sphi 0, %s137
      %s154 = sphi 0, %s138
    $region4: #{tpu_custom_call.1} parent=1 // loop_header_branch
      %17 = sbr.rel (%p15) target = $region8
    $region5: #{tpu_custom_call.1} parent=1 // loop_body
      %s19 = ssub.s32 %s14, 1
      %s20 = ssub.s32 %s14, 2
      %s21 = sadd.s32 %s14, 1
      %s22 = ssub.s32 %s14, %s21
      %p23 = scmp.eq.s32.totalorder %s22, 0
      %s25 = sadd.s32 %s24, 1
      %s26 = scalar_select %p23, %s24, %s25
      %p29 = pneg %p23
      %p30 = scmp.eq.s32.totalorder %s14, 1
      %p31 = por %p29, %p30
      %p32 = scmp.ne.s32.totalorder %s24, %s27
      %p33 = scmp.eq.s32.totalorder %s14, 0
      %p34 = por %p32, %p33
      %p35 = scmp.ne.s32.totalorder %s24, %s27
      %p36 = scmp.eq.s32.totalorder %s19, 1
      %p37 = por %p35, %p36
      %p38 = scmp.ne.s32.totalorder %s27, %s28
      %p39 = scmp.eq.s32.totalorder %s19, 0
      %p40 = por %p38, %p39
      %p41 = scmp.ne.s32.totalorder %s27, %s28
      %p42 = scmp.eq.s32.totalorder %s20, 1
      %p43 = por %p41, %p42
      %p45 = scmp.ne.s32.totalorder %s28, %s44
      %p46 = scmp.eq.s32.totalorder %s20, 0
      %p47 = por %p45, %p46
      %s49 = sadd.s32 %s48, 1
      %p52 = scmp.eq.s32.totalorder %s14, 1
      %p53 = scmp.ne.s32.totalorder %s48, %s50
      %p54 = scmp.eq.s32.totalorder %s14, 0
      %p55 = por %p53, %p54
      %p56 = scmp.ne.s32.totalorder %s48, %s50
      %p57 = scmp.eq.s32.totalorder %s19, 1
      %p58 = por %p56, %p57
      %p59 = scmp.ne.s32.totalorder %s50, %s51
      %p60 = scmp.eq.s32.totalorder %s19, 0
      %p61 = por %p59, %p60
      %p62 = scmp.ne.s32.totalorder %s50, %s51
      %p63 = scmp.eq.s32.totalorder %s20, 1
      %p64 = por %p62, %p63
      %p66 = scmp.ne.s32.totalorder %s51, %s65
      %p67 = scmp.eq.s32.totalorder %s20, 0
      %p68 = por %p66, %p67
      %s70 = sadd.s32 %s69, 1
      %p73 = scmp.eq.s32.totalorder %s14, 1
      %p74 = scmp.ne.s32.totalorder %s69, %s71
      %p75 = scmp.eq.s32.totalorder %s14, 0
      %p76 = por %p74, %p75
      %p77 = scmp.ne.s32.totalorder %s69, %s71
      %p78 = scmp.eq.s32.totalorder %s19, 1
      %p79 = por %p77, %p78
      %p80 = scmp.ne.s32.totalorder %s71, %s72
      %p81 = scmp.eq.s32.totalorder %s19, 0
      %p82 = por %p80, %p81
      %p83 = scmp.ne.s32.totalorder %s71, %s72
      %p84 = scmp.eq.s32.totalorder %s20, 1
      %p85 = por %p83, %p84
      %p87 = scmp.ne.s32.totalorder %s72, %s86
      %p88 = scmp.eq.s32.totalorder %s20, 0
      %p89 = por %p87, %p88
      %s91 = sadd.s32 %s90, 1
      %p94 = scmp.eq.s32.totalorder %s14, 1
      %p95 = scmp.ne.s32.totalorder %s90, %s92
      %p96 = scmp.eq.s32.totalorder %s14, 0
      %p97 = por %p95, %p96
      %p98 = scmp.ne.s32.totalorder %s90, %s92
      %p99 = scmp.eq.s32.totalorder %s19, 1
      %p100 = por %p98, %p99
      %p101 = scmp.ne.s32.totalorder %s92, %s93
      %p102 = scmp.eq.s32.totalorder %s19, 0
      %p103 = por %p101, %p102
      %p104 = scmp.ne.s32.totalorder %s92, %s93
      %p105 = scmp.eq.s32.totalorder %s20, 1
      %p106 = por %p104, %p105
      %p108 = scmp.ne.s32.totalorder %s93, %s107
      %p109 = scmp.eq.s32.totalorder %s20, 0
      %p110 = por %p108, %p109
      %s112 = sadd.s32 %s111, 1
      %p115 = scmp.eq.s32.totalorder %s14, 1
      %p116 = scmp.ne.s32.totalorder %s111, %s113
      %p117 = scmp.eq.s32.totalorder %s14, 0
      %p118 = por %p116, %p117
      %p119 = scmp.ne.s32.totalorder %s111, %s113
      %p120 = scmp.eq.s32.totalorder %s19, 1
      %p121 = por %p119, %p120
      %p122 = scmp.ne.s32.totalorder %s113, %s114
      %p123 = scmp.eq.s32.totalorder %s19, 0
      %p124 = por %p122, %p123
      %p125 = scmp.ne.s32.totalorder %s113, %s114
      %p126 = scmp.eq.s32.totalorder %s20, 1
      %p127 = por %p125, %p126
      %p129 = scmp.ne.s32.totalorder %s114, %s128
      %p130 = scmp.eq.s32.totalorder %s20, 0
      %p131 = por %p129, %p130
      %s132 = ssub.s32 %s14, %s21
      %p133 = scmp.eq.s32.totalorder %s132, 0
      %s135 = sadd.s32 %s134, 1
      %s136 = scalar_select %p133, %s134, %s135
      %p139 = pneg %p133
      %p140 = scmp.eq.s32.totalorder %s14, 1
      %p141 = por %p139, %p140
      %p142 = scmp.ne.s32.totalorder %s134, %s137
      %p143 = scmp.eq.s32.totalorder %s14, 0
      %p144 = por %p142, %p143
      %p145 = scmp.ne.s32.totalorder %s134, %s137
      %p146 = scmp.eq.s32.totalorder %s19, 1
      %p147 = por %p145, %p146
      %p148 = scmp.ne.s32.totalorder %s137, %s138
      %p149 = scmp.eq.s32.totalorder %s19, 0
      %p150 = por %p148, %p149
      %p151 = scmp.ne.s32.totalorder %s137, %s138
      %p152 = scmp.eq.s32.totalorder %s20, 1
      %p153 = por %p151, %p152
      %p155 = scmp.ne.s32.totalorder %s138, %s154
      %p156 = scmp.eq.s32.totalorder %s20, 0
      %p157 = por %p155, %p156
      %p158 = scmp.le.s32.totalorder 1, %s14
      %p159 = scmp.lt.s32.totalorder %s14, 3
      %p160 = pnand %p158, %p159
      %p161 = pneg %p160
      // Predicated region
      $region9: #{tpu_custom_call.1} parent=5 // pred_check
        _
      $region10: #{tpu_custom_call.1} parent=5 // pred_check_branch
        %163 = sbr.rel (%p160) target = $region12
      $region11: #{tpu_custom_call.1} parent=5 // pred_region
        %s164 = ssub.s32 %s14, 1
        // Predicated region
        $region13: #{tpu_custom_call.1} parent=11 // pred_check
          %p165 = pneg %p61
        $region14: #{tpu_custom_call.1} parent=11 // pred_check_branch
          %167 = sbr.rel (%p165) target = $region16
        $region15: #{tpu_custom_call.1} parent=11 // pred_region
          _
        $region16: #{tpu_custom_call.1} parent=11 // pred_fallthru
          _
        // Predicated region
        $region17: #{tpu_custom_call.1} parent=11 // pred_check
          %p168 = pneg %p82
        $region18: #{tpu_custom_call.1} parent=11 // pred_check_branch
          %170 = sbr.rel (%p168) target = $region20
        $region19: #{tpu_custom_call.1} parent=11 // pred_region
          _
        $region20: #{tpu_custom_call.1} parent=11 // pred_fallthru
          _
        // Predicated region
        $region21: #{tpu_custom_call.1} parent=11 // pred_check
          %p171 = pneg %p103
        $region22: #{tpu_custom_call.1} parent=11 // pred_check_branch
          %173 = sbr.rel (%p171) target = $region24
        $region23: #{tpu_custom_call.1} parent=11 // pred_region
          _
        $region24: #{tpu_custom_call.1} parent=11 // pred_fallthru
          _
        // Predicated region
        $region25: #{tpu_custom_call.1} parent=11 // pred_check
          %p174 = pneg %p124
        $region26: #{tpu_custom_call.1} parent=11 // pred_check_branch
          %176 = sbr.rel (%p174) target = $region28
        $region27: #{tpu_custom_call.1} parent=11 // pred_region
          _
        $region28: #{tpu_custom_call.1} parent=11 // pred_fallthru
          _
      $region12: #{tpu_custom_call.1} parent=5 // pred_fallthru
        _
      %p177 = scmp.lt.s32.totalorder %s14, 2
      // Predicated region
      $region29: #{tpu_custom_call.1} parent=5 // pred_check
        %p178 = pneg %p177
      $region30: #{tpu_custom_call.1} parent=5 // pred_check_branch
        %180 = sbr.rel (%p178) target = $region32
      $region31: #{tpu_custom_call.1} parent=5 // pred_region
        // Predicated region
        $region33: #{tpu_custom_call.1} parent=31 // pred_check
          %p181 = pneg %p34
        $region34: #{tpu_custom_call.1} parent=31 // pred_check_branch
          %183 = sbr.rel (%p181) target = $region36
        $region35: #{tpu_custom_call.1} parent=31 // pred_region
          %p184 = scmp.lt.s32.totalorder %s14, 1
          %s185 = scalar_select %p184, %s14, 1
          %s186 = smul.addr %s185, 8
          %s187 = scalar_lea.vmem %s0, %s186
        $region36: #{tpu_custom_call.1} parent=31 // pred_fallthru
          _
      $region32: #{tpu_custom_call.1} parent=5 // pred_fallthru
        _
      %p188 = scmp.le.s32.totalorder 1, %s14
      %p189 = scmp.lt.s32.totalorder %s14, 3
      %p190 = pnand %p188, %p189
      %p191 = pneg %p190
      // Predicated region
      $region37: #{tpu_custom_call.1} parent=5 // pred_check
        _
      $region38: #{tpu_custom_call.1} parent=5 // pred_check_branch
        %193 = sbr.rel (%p190) target = $region40
      $region39: #{tpu_custom_call.1} parent=5 // pred_region
        %s194 = ssub.s32 %s14, 1
        %p195 = scmp.lt.s32.totalorder %s19, 1
        %s196 = scalar_select %p195, %s19, 1
        %s197 = smul.addr %s196, 8
        %s198 = scalar_lea.vmem %s0, %s197
        %p199 = pneg %p40
        %p200 = pneg %p37
        %p201 = pneg %p61
        %p202 = pneg %p58
        %p203 = pneg %p82
        %p204 = pneg %p79
        %p205 = pneg %p103
        %p206 = pneg %p100
        %p207 = pneg %p124
        %p208 = pneg %p121
        %p209 = pneg %p150
        %p210 = pneg %p147
        %s211 = sand.u32 %s137, 1
        %s212 = scalar_lea.sflag [#allocation3], %s211
        %s213 = sand.u32 %s137, 1
        %s214 = smul.addr %s213, 8
        %s215 = scalar_lea.vmem [#allocation2], %s214
        %p216 = scmp.lt.s32.totalorder %s19, 1
        %s217 = scalar_select %p216, %s19, 1
        %s218 = smul.addr %s217, 8
        %s219 = scalar_lea.vmem %s0, %s218
        %v220 = vld [vmem:[%s219] sm:$0xff]
        %222 = vrot.lane.b32.xlu0 %v220, 127
        %v223 = vpop.permute.xlu0 %222
        %225 = vrot.lane.b32.xlu0 %v220, 126
        %v226 = vpop.permute.xlu0 %225
        %v228 = vld [vmem:[%s1] sm:$0xff]
        %v229 = vld [vmem:[%s1 + $0x8] sm:$0xff]
        %v230 = vld [vmem:[%s1 + $0x10] sm:$0xff]
        %v231 = vld [vmem:[%s1 + $0x18] sm:$0xff]
        %vm232 = vcmask 195584
        %v234 = vsel %vm232, %v228, 0
        %v237 = vsel %vm232, %v229, 0
        %v240 = vsel %vm232, %v230, 0
        %v243 = vsel %vm232, %v231, 0
        %245 = vmatprep.subr.mxu0 0.0
        %246 = vmatpush1.msra.mxu0 %v220
        %247 = vmatprep.subr.mxu0 0.0
        %248 = vmatpush1.msra.mxu0 %v223
        %249 = vmatprep.subr.mxu0 0.0
        %250 = vmatpush1.msra.mxu0 %v226
        %251 = vmatprep.subr.mxu0 0.0
        %252 = vmatpush1.msra.mxu0 0.0
        %253 = vmatprep.subr.mxu0 0.0
        %254 = vmatpush1.msra.mxu0 0.0
        %255 = vmatprep.subr.mxu0 0.0
        %256 = vmatpush1.msra.mxu0 0.0
        %257 = vmatprep.subr.mxu0 0.0
        %258 = vmatpush1.msra.mxu0 0.0
        %259 = vmatprep.subr.mxu0 0.0
        %260 = vmatpush1.msra.mxu0 0.0
        %261 = vmatprep.subr.mxu0 0.0
        %262 = vmatpush1.msra.mxu0 0.0
        %263 = vmatprep.subr.mxu0 0.0
        %264 = vmatpush1.msra.mxu0 0.0
        %265 = vmatprep.subr.mxu0 0.0
        %266 = vmatpush1.msra.mxu0 0.0
        %267 = vmatprep.subr.mxu0 0.0
        %268 = vmatpush1.msra.mxu0 0.0
        %269 = vmatprep.subr.mxu0 0.0
        %270 = vmatpush1.msra.mxu0 0.0
        %271 = vmatprep.subr.mxu0 0.0
        %272 = vmatpush1.msra.mxu0 0.0
        %273 = vmatprep.subr.mxu0 0.0
        %274 = vmatpush1.msra.mxu0 0.0
        %275 = vmatprep.subr.mxu0 0.0
        %276 = vmatpush1.msra.mxu0 0.0
        %277 = vmatprep.subr.mxu0 0.0
        %278 = vmatpush1.msra.mxu0 0.0
        %279 = vmatprep.subr.mxu0 0.0
        %280 = vmatpush1.msra.mxu0 0.0
        %281 = vmatprep.subr.mxu0 0.0
        %282 = vmatpush1.msra.mxu0 0.0
        %283 = vmatprep.subr.mxu0 0.0
        %284 = vmatpush1.msra.mxu0 0.0
        %285 = vmatprep.subr.mxu0 0.0
        %286 = vmatpush1.msra.mxu0 0.0
        %287 = vmatprep.subr.mxu0 0.0
        %288 = vmatpush1.msra.mxu0 0.0
        %289 = vmatprep.subr.mxu0 0.0
        %290 = vmatpush1.msra.mxu0 0.0
        %291 = vmatprep.subr.mxu0 0.0
        %292 = vmatpush1.msra.mxu0 0.0
        %293 = vmatprep.subr.mxu0 0.0
        %294 = vmatpush1.msra.mxu0 0.0
        %295 = vmatprep.subr.mxu0 0.0
        %296 = vmatpush1.msra.mxu0 0.0
        %297 = vmatprep.subr.mxu0 0.0
        %298 = vmatpush1.msra.mxu0 0.0
        %299 = vmatprep.subr.mxu0 0.0
        %300 = vmatpush1.msra.mxu0 0.0
        %301 = vmatprep.subr.mxu0 0.0
        %302 = vmatpush1.msra.mxu0 0.0
        %303 = vmatprep.subr.mxu0 0.0
        %304 = vmatpush1.msra.mxu0 0.0
        %305 = vmatprep.subr.mxu0 0.0
        %306 = vmatpush1.msra.mxu0 0.0
        %307 = vmatprep.subr.mxu0 0.0
        %308 = vmatpush1.msra.mxu0 0.0
        %309 = vmatprep.mubr.f32.mxu0 0.0
        %310 = vmatmul.mubr.f32.gmra.mrb[0].mxu0 %v234
        %v311 = vpop.f32.mrb[0].mxu0
        %v312 = vadd.f32 0.0, %v311
        %v313 = vpop.f32.mrb[0].mxu0
        %314 = vmatprep.mubr.f32.mxu0 0.0
        %315 = vmatmul.mubr.f32.gmra.mrb[0].mxu0 %v237
        %v316 = vpop.f32.mrb[0].mxu0
        %v317 = vadd.f32 0.0, %v316
        %v318 = vpop.f32.mrb[0].mxu0
        %319 = vmatprep.mubr.f32.mxu0 0.0
        %320 = vmatmul.mubr.f32.gmra.mrb[0].mxu0 %v240
        %v321 = vpop.f32.mrb[0].mxu0
        %v322 = vadd.f32 0.0, %v321
        %v323 = vpop.f32.mrb[0].mxu0
        %324 = vmatprep.mubr.f32.mxu0 0.0
        %325 = vmatmul.mubr.f32.gmra.mrb[0].mxu0 %v243
        %v326 = vpop.f32.mrb[0].mxu0
        %v327 = vadd.f32 0.0, %v326
        %v328 = vpop.f32.mrb[0].mxu0
        %329 = vdwg.mxu0
        %v330 = vld [vmem:[%s3] sm:$0xff]
        %v331 = vld [vmem:[%s3 + $0x8] sm:$0xff]
        %v332 = vld [vmem:[%s3 + $0x10] sm:$0xff]
        %v333 = vld [vmem:[%s3 + $0x18] sm:$0xff]
        %s334 = scalar_lea.vmem %s3, 32
        %v335 = vld [vmem:[%s334] sm:$0xff]
        %v336 = vld [vmem:[%s334 + $0x8] sm:$0xff]
        %v337 = vld [vmem:[%s334 + $0x10] sm:$0xff]
        %v338 = vld [vmem:[%s334 + $0x18] sm:$0xff]
        %vm339 = vcmask 261120
        %v340 = vsel %vm339, %v312, 0.0
        %341 = vadd.xlane.f32.xlu0 %v340
        %v342 = vpop.xlane.xlu0 %341
        %v343 = vsel %vm339, %v317, 0.0
        %344 = vadd.xlane.f32.xlu0 %v343
        %v345 = vpop.xlane.xlu0 %344
        %v346 = vsel %vm339, %v322, 0.0
        %347 = vadd.xlane.f32.xlu0 %v346
        %v348 = vpop.xlane.xlu0 %347
        %v349 = vsel %vm339, %v327, 0.0
        %350 = vadd.xlane.f32.xlu0 %v349
        %v351 = vpop.xlane.xlu0 %350
        %v352 = vrcp.pop 32.0
        %v353 = vmul.f32 %v342, %v352
        %v354 = vmul.f32 %v345, %v352
        %v355 = vmul.f32 %v348, %v352
        %v356 = vmul.f32 %v351, %v352
        %v357 = vmul.f32 %v312, %v312
        %v358 = vmul.f32 %v317, %v317
        %v359 = vmul.f32 %v322, %v322
        %v360 = vmul.f32 %v327, %v327
        %v361 = vsel %vm339, %v357, 0.0
        %362 = vadd.xlane.f32.xlu0 %v361
        %v363 = vpop.xlane.xlu0 %362
        %v364 = vsel %vm339, %v358, 0.0
        %365 = vadd.xlane.f32.xlu0 %v364
        %v366 = vpop.xlane.xlu0 %365
        %v367 = vsel %vm339, %v359, 0.0
        %368 = vadd.xlane.f32.xlu0 %v367
        %v369 = vpop.xlane.xlu0 %368
        %v370 = vsel %vm339, %v360, 0.0
        %371 = vadd.xlane.f32.xlu0 %v370
        %v372 = vpop.xlane.xlu0 %371
        %v373 = vmul.f32 %v363, %v352
        %v374 = vmul.f32 %v366, %v352
        %v375 = vmul.f32 %v369, %v352
        %v376 = vmul.f32 %v372, %v352
        %v377 = vmul.f32 %v353, %v353
        %v378 = vmul.f32 %v354, %v354
        %v379 = vmul.f32 %v355, %v355
        %v380 = vmul.f32 %v356, %v356
        %v381 = vsub.f32 %v373, %v377
        %v382 = vsub.f32 %v374, %v378
        %v383 = vsub.f32 %v375, %v379
        %v384 = vsub.f32 %v376, %v380
        %v385 = vmax.f32 %v381, 0.0
        %v386 = vmax.f32 %v382, 0.0
        %v387 = vmax.f32 %v383, 0.0
        %v388 = vmax.f32 %v384, 0.0
        %v389 = vsub.f32 %v312, %v353
        %v390 = vsub.f32 %v317, %v354
        %v391 = vsub.f32 %v322, %v355
        %v392 = vsub.f32 %v327, %v356
        %v393 = vadd.f32 %v385, 1e-05
        %v394 = vadd.f32 %v386, 1e-05
        %v395 = vadd.f32 %v387, 1e-05
        %v396 = vadd.f32 %v388, 1e-05
        %v397 = vrsqrt.pop %v393
        %v398 = vrsqrt.pop %v394
        %v399 = vrsqrt.pop %v395
        %v400 = vrsqrt.pop %v396
        %v401 = vmul.f32 %v389, %v397
        %v402 = vmul.f32 %v390, %v398
        %v403 = vmul.f32 %v391, %v399
        %v404 = vmul.f32 %v392, %v400
        %406 = vset.pattern.permute.xlu0 0
        %407 = vperm.xlu0 %406, %v330
        %v408 = vpop.permute.xlu0 %407
        %411 = vset.pattern.permute.xlu0 0
        %412 = vperm.xlu0 %411, %v331
        %v413 = vpop.permute.xlu0 %412
        %416 = vset.pattern.permute.xlu0 0
        %417 = vperm.xlu0 %416, %v332
        %v418 = vpop.permute.xlu0 %417
        %421 = vset.pattern.permute.xlu0 0
        %422 = vperm.xlu0 %421, %v333
        %v423 = vpop.permute.xlu0 %422
        %v425 = vmul.f32 %v401, %v408
        %v426 = vmul.f32 %v402, %v413
        %v427 = vmul.f32 %v403, %v418
        %v428 = vmul.f32 %v404, %v423
        %430 = vset.pattern.permute.xlu0 0
        %431 = vperm.xlu0 %430, %v335
        %v432 = vpop.permute.xlu0 %431
        %435 = vset.pattern.permute.xlu0 0
        %436 = vperm.xlu0 %435, %v336
        %v437 = vpop.permute.xlu0 %436
        %440 = vset.pattern.permute.xlu0 0
        %441 = vperm.xlu0 %440, %v337
        %v442 = vpop.permute.xlu0 %441
        %445 = vset.pattern.permute.xlu0 0
        %446 = vperm.xlu0 %445, %v338
        %v447 = vpop.permute.xlu0 %446
        %v449 = vadd.f32 %v425, %v432
        %v450 = vadd.f32 %v426, %v437
        %v451 = vadd.f32 %v427, %v442
        %v452 = vadd.f32 %v428, %v447
        %v453 = vxor.u32 %v451, 2147483648
        %v454 = vxor.u32 %v452, 2147483648
        %v455 = vmul.f32 %v453, 1.442695
        %v456 = vpow.pop %v455
        %v457 = vmul.f32 %v454, 1.442695
        %v458 = vpow.pop %v457
        %v459 = vadd.f32 %v456, 1.0
        %v460 = vadd.f32 %v458, 1.0
        %v461 = vrcp.pop %v459
        %v462 = vmul.f32 1.0, %v461
        %v463 = vrcp.pop %v460
        %v464 = vmul.f32 1.0, %v463
        %v465 = vmul.f32 %v449, %v462
        %v466 = vmul.f32 %v450, %v464
        %469 = vrot.lane.b32.xlu0 %v465, 1
        %v470 = vpop.permute.xlu0 %469
        %471 = vrot.lane.b32.xlu0 %v466, 1
        %v472 = vpop.permute.xlu0 %471
        %vm475 = vcmask 7168
        %v476 = vsel %vm475, 0.0, %v470
        %v477 = vsel %vm475, 0.0, %v472
        %vm478 = vcmask 269312
        %v479 = vsel %vm478, %v476, 0.0
        %v480 = vsel %vm478, %v477, 0.0
        %483 = vrot.lane.b32.xlu0 %v479, 127
        %v484 = vpop.permute.xlu0 %483
        %485 = vrot.lane.b32.xlu0 %v480, 127
        %v486 = vpop.permute.xlu0 %485
        %489 = vrot.lane.b32.xlu0 %v479, 126
        %v490 = vpop.permute.xlu0 %489
        %491 = vrot.lane.b32.xlu0 %v480, 126
        %v492 = vpop.permute.xlu0 %491
        %v495 = vld [vmem:[%s2] sm:$0xff]
        %vm496 = vcmask 392192
        %v498 = vsel %vm496, %v495, 0
        %500 = vmatprep.subr.mxu0 0.0
        %501 = vmatpush1.msra.mxu0 %v479
        %502 = vmatprep.subr.mxu0 0.0
        %503 = vmatpush1.msra.mxu0 %v480
        %504 = vmatprep.subr.mxu0 0.0
        %505 = vmatpush1.msra.mxu0 %v484
        %506 = vmatprep.subr.mxu0 0.0
        %507 = vmatpush1.msra.mxu0 %v486
        %508 = vmatprep.subr.mxu0 0.0
        %509 = vmatpush1.msra.mxu0 %v490
        %510 = vmatprep.subr.mxu0 0.0
        %511 = vmatpush1.msra.mxu0 %v492
        %512 = vmatprep.subr.mxu0 0.0
        %513 = vmatpush1.msra.mxu0 0.0
        %514 = vmatprep.subr.mxu0 0.0
        %515 = vmatpush1.msra.mxu0 0.0
        %516 = vmatprep.subr.mxu0 0.0
        %517 = vmatpush1.msra.mxu0 0.0
        %518 = vmatprep.subr.mxu0 0.0
        %519 = vmatpush1.msra.mxu0 0.0
        %520 = vmatprep.subr.mxu0 0.0
        %521 = vmatpush1.msra.mxu0 0.0
        %522 = vmatprep.subr.mxu0 0.0
        %523 = vmatpush1.msra.mxu0 0.0
        %524 = vmatprep.subr.mxu0 0.0
        %525 = vmatpush1.msra.mxu0 0.0
        %526 = vmatprep.subr.mxu0 0.0
        %527 = vmatpush1.msra.mxu0 0.0
        %528 = vmatprep.subr.mxu0 0.0
        %529 = vmatpush1.msra.mxu0 0.0
        %530 = vmatprep.subr.mxu0 0.0
        %531 = vmatpush1.msra.mxu0 0.0
        %532 = vmatprep.subr.mxu0 0.0
        %533 = vmatpush1.msra.mxu0 0.0
        %534 = vmatprep.subr.mxu0 0.0
        %535 = vmatpush1.msra.mxu0 0.0
        %536 = vmatprep.subr.mxu0 0.0
        %537 = vmatpush1.msra.mxu0 0.0
        %538 = vmatprep.subr.mxu0 0.0
        %539 = vmatpush1.msra.mxu0 0.0
        %540 = vmatprep.subr.mxu0 0.0
        %541 = vmatpush1.msra.mxu0 0.0
        %542 = vmatprep.subr.mxu0 0.0
        %543 = vmatpush1.msra.mxu0 0.0
        %544 = vmatprep.subr.mxu0 0.0
        %545 = vmatpush1.msra.mxu0 0.0
        %546 = vmatprep.subr.mxu0 0.0
        %547 = vmatpush1.msra.mxu0 0.0
        %548 = vmatprep.subr.mxu0 0.0
        %549 = vmatpush1.msra.mxu0 0.0
        %550 = vmatprep.subr.mxu0 0.0
        %551 = vmatpush1.msra.mxu0 0.0
        %552 = vmatprep.subr.mxu0 0.0
        %553 = vmatpush1.msra.mxu0 0.0
        %554 = vmatprep.subr.mxu0 0.0
        %555 = vmatpush1.msra.mxu0 0.0
        %556 = vmatprep.subr.mxu0 0.0
        %557 = vmatpush1.msra.mxu0 0.0
        %558 = vmatprep.subr.mxu0 0.0
        %559 = vmatpush1.msra.mxu0 0.0
        %560 = vmatprep.subr.mxu0 0.0
        %561 = vmatpush1.msra.mxu0 0.0
        %562 = vmatprep.subr.mxu0 0.0
        %563 = vmatpush1.msra.mxu0 0.0
        %564 = vmatprep.mubr.f32.mxu0 0.0
        %565 = vmatmul.mubr.f32.gmra.mrb[0].mxu0 %v498
        %v566 = vpop.f32.mrb[0].mxu0
        %v567 = vadd.f32 0.0, %v566
        %v568 = vpop.f32.mrb[0].mxu0
        %569 = vdwg.mxu0
        %v570 = vld [vmem:[%s4] sm:$0xff]
        %s571 = scalar_lea.vmem %s4, 8
        %v572 = vld [vmem:[%s571] sm:$0xff]
        %v573 = vsel %vm339, %v567, 0.0
        %574 = vadd.xlane.f32.xlu0 %v573
        %v575 = vpop.xlane.xlu0 %574
        %v576 = vmul.f32 %v575, %v352
        %v577 = vmul.f32 %v567, %v567
        %v578 = vsel %vm339, %v577, 0.0
        %579 = vadd.xlane.f32.xlu0 %v578
        %v580 = vpop.xlane.xlu0 %579
        %v581 = vmul.f32 %v580, %v352
        %v582 = vmul.f32 %v576, %v576
        %v583 = vsub.f32 %v581, %v582
        %v584 = vmax.f32 %v583, 0.0
        %v585 = vsub.f32 %v567, %v576
        %v586 = vadd.f32 %v584, 1e-05
        %v587 = vrsqrt.pop %v586
        %v588 = vmul.f32 %v585, %v587
        %590 = vset.pattern.permute.xlu0 0
        %591 = vperm.xlu0 %590, %v570
        %v592 = vpop.permute.xlu0 %591
        %v594 = vmul.f32 %v588, %v592
        %596 = vset.pattern.permute.xlu0 0
        %597 = vperm.xlu0 %596, %v572
        %v598 = vpop.permute.xlu0 %597
        %v600 = vadd.f32 %v594, %v598
        %602 = vrot.lane.b32.xlu0 %v600, 1
        %v603 = vpop.permute.xlu0 %602
        %v605 = vadd.f32 %v220, %v603
        %607 = vrot.lane.b32.xlu0 %v605, 127
        %v608 = vpop.permute.xlu0 %607
        %610 = vst.msk [vmem:[%s215] sm:$0xff] %vm339, %v608
        %s611 = sand.u32 %s137, 1
        %s612 = scalar_lea.sflag [#allocation3], %s611
        %s613 = sand.u32 %s137, 1
        %s614 = smul.addr %s613, 8
        %s615 = scalar_lea.vmem [#allocation2], %s614
        // Predicated region
        $region41: #{tpu_custom_call.1} parent=39 // pred_check
          %p616 = pneg %p147
        $region42: #{tpu_custom_call.1} parent=39 // pred_check_branch
          %618 = sbr.rel (%p616) target = $region44
        $region43: #{tpu_custom_call.1} parent=39 // pred_region
          %s620 = ssub.s32 128, 128
          %621 = vsyncadd %s612, %s620
          %s622 = smul.addr %s19, 128
          %s623 = scalar_lea.hbm %s5, %s622
          %s625 = sshll.u32 %s615, 4
          %s626 = int_to_ptr.vmem [resolvable:$true] %s625
          %628 = dma.vmem_to_hbm [thread:$0]  %s626, 128, %s623, %s612
        $region44: #{tpu_custom_call.1} parent=39 // pred_fallthru
          _
      $region40: #{tpu_custom_call.1} parent=5 // pred_fallthru
        _
      %p629 = scmp.le.s32.totalorder 2, %s14
      // Predicated region
      $region45: #{tpu_custom_call.1} parent=5 // pred_check
        %p630 = pneg %p629
      $region46: #{tpu_custom_call.1} parent=5 // pred_check_branch
        %632 = sbr.rel (%p630) target = $region48
      $region47: #{tpu_custom_call.1} parent=5 // pred_region
        %s633 = ssub.s32 %s14, 2
        // Predicated region
        $region49: #{tpu_custom_call.1} parent=47 // pred_check
          %p634 = pneg %p153
        $region50: #{tpu_custom_call.1} parent=47 // pred_check_branch
          %636 = sbr.rel (%p634) target = $region52
        $region51: #{tpu_custom_call.1} parent=47 // pred_region
          %s637 = sand.u32 %s138, 1
          %s638 = scalar_lea.sflag [#allocation3], %s637
          %s639 = sand.u32 %s138, 1
          %s640 = smul.addr %s639, 8
          %s641 = scalar_lea.vmem [#allocation2], %s640
          %642 = dma.done %s638, 128
        $region52: #{tpu_custom_call.1} parent=47 // pred_fallthru
          _
      $region48: #{tpu_custom_call.1} parent=5 // pred_fallthru
        _
    $region6: #{tpu_custom_call.1} parent=1 // loop_footer
      %s18 = sadd.s32 1, %s14
    $region7: #{tpu_custom_call.1} parent=1 // loop_footer_branch
      %13 = sbr.rel target = $region3
    $region8: #{tpu_custom_call.1} parent=1 // loop_exit
      _
    %643 = vsyncpa [#allocation3], 1
    %s644 = scalar_lea.sflag [#allocation3], 1
    %645 = vsyncpa %s644, 1

</llo_original>
